<compile_context>
chip_gen: v7x
topology: tpu7x:2x2x1
jax: 0.10.0
libtpu: 0.0.40
codegen_flags: <defaults>
</compile_context>

<pallas_src>
import jax
import jax.numpy as jnp
from jax.experimental import pallas as pl
from jax.experimental.pallas import tpu as pltpu


def _mish_kernel(x_ref, o_ref):
    x = x_ref[...].astype(jnp.float32)
    # numerically-stable softplus: log(1 + e^x) = max(x, 0) + log1p(e^{-|x|})
    sp = jnp.maximum(x, 0.0) + jnp.log1p(jnp.exp(-jnp.abs(x)))
    o_ref[...] = (x * jnp.tanh(sp)).astype(o_ref.dtype)


def mish_pallas(x, *, lane=512, max_rows=256):
    """Element-wise Mish: x * tanh(softplus(x)).  Any shape, any float dtype."""
    shape, dtype = x.shape, x.dtype
    total = x.size

    # Flatten to a lane-dense (M, lane) slab; pad the ragged tail (padded
    # elements compute garbage that is sliced away — correct for a pure
    # element-wise op).
    M = pl.cdiv(total, lane)
    tm = min(max_rows, M)           # block rows (full extent when M is small)
    n_blocks = pl.cdiv(M, tm)
    m_pad = n_blocks * tm

    xf = jnp.ravel(x)
    pad = m_pad * lane - total
    if pad:
        xf = jnp.pad(xf, (0, pad))
    x2 = xf.reshape(m_pad, lane)

    out = pl.pallas_call(
        _mish_kernel,
        out_shape=jax.ShapeDtypeStruct((m_pad, lane), dtype),
        grid=(n_blocks,),
        in_specs=[pl.BlockSpec((tm, lane), lambda i: (i, 0))],
        out_specs=pl.BlockSpec((tm, lane), lambda i: (i, 0)),
        compiler_params=pltpu.CompilerParams(
            dimension_semantics=("parallel",),
            vmem_limit_bytes=32 * 1024 * 1024,
        ),
    )(x2)

    return out.reshape(-1)[:total].reshape(shape)


def _mish_ref(x):
    return x * jnp.tanh(jax.nn.softplus(x))


if __name__ == "__main__":
    key = jax.random.PRNGKey(0)
    k1, k2 = jax.random.split(key)

    # Shape consistent with how ResUnet uses Mish (3-D conv feature maps).
    x = 4.0 * jax.random.normal(k1, (2, 4, 16, 16, 16), jnp.float32)
    out = jax.block_until_ready(jax.jit(mish_pallas)(x))
    assert out.shape == x.shape and out.dtype == x.dtype
    ref = jax.block_until_ready(_mish_ref(x))
    assert jnp.allclose(out, ref, rtol=1e-5, atol=1e-5), float(
        jnp.max(jnp.abs(out - ref)))

    # Ragged size (not a multiple of the 512-lane slab) exercises the pad path.
    y = 4.0 * jax.random.normal(k2, (3, 5, 7), jnp.float32)
    out_y = jax.block_until_ready(jax.jit(mish_pallas)(y))
    ref_y = jax.block_until_ready(_mish_ref(y))
    assert out_y.shape == y.shape
    assert jnp.allclose(out_y, ref_y, rtol=1e-5, atol=1e-5), float(
        jnp.max(jnp.abs(out_y - ref_y)))

    print("KERNEL_OK")
</pallas_src>

<mosaic_0001>
module attributes {stable_mosaic.version = 11 : i64} {
  func.func @_mish_kernel(%arg0: i32, %arg1: memref<64x512xf32, #tpu.memory_space<vmem>>, %arg2: memref<64x512xf32, #tpu.memory_space<vmem>>) attributes {dimension_semantics = [#tpu.dimension_semantics<parallel>], iteration_bounds = array<i64: 1>, scalar_prefetch = 0 : i64, scratch_operands = 0 : i64, tpu.core_type = #tpu.core_type<tc>, window_params = [{transform_indices = @transform_0, window_bounds = array<i64: 64, 512>}, {transform_indices = @transform_1, window_bounds = array<i64: 64, 512>}]} {
    %c0 = arith.constant 0 : index
    %c0_0 = arith.constant 0 : index
    %0 = vector.load %arg1[%c0, %c0_0] : memref<64x512xf32, #tpu.memory_space<vmem>>, vector<64x512xf32>
    %cst = arith.constant 0.000000e+00 : f32
    %1 = vector.broadcast %cst : f32 to vector<64x512xf32>
    %2 = arith.maximumf %0, %1 : vector<64x512xf32>
    %3 = math.absf %0 : vector<64x512xf32>
    %cst_1 = arith.constant 0.000000e+00 : f32
    %4 = vector.broadcast %cst_1 : f32 to vector<64x512xf32>
    %5 = arith.subf %4, %3 : vector<64x512xf32>
    %6 = math.exp %5 : vector<64x512xf32>
    %7 = math.log1p %6 : vector<64x512xf32>
    %8 = arith.addf %2, %7 : vector<64x512xf32>
    %9 = math.tanh %8 : vector<64x512xf32>
    %10 = arith.mulf %0, %9 : vector<64x512xf32>
    %c0_2 = arith.constant 0 : index
    %c0_3 = arith.constant 0 : index
    %11 = vector.load %arg2[%c0_2, %c0_3] : memref<64x512xf32, #tpu.memory_space<vmem>>, vector<64x512xf32>
    tpu.vector_store %arg2[%c0_2, %c0_3], %10 {strides = array<i32>} : memref<64x512xf32, #tpu.memory_space<vmem>>, vector<64x512xf32>,
    return
  }
  func.func @transform_0(%arg0: i32) -> (i32, i32) {
    %c0_i32 = arith.constant 0 : i32
    %c0_i32_0 = arith.constant 0 : i32
    return %arg0, %c0_i32 : i32, i32
  }
  func.func @transform_1(%arg0: i32) -> (i32, i32) {
    %c0_i32 = arith.constant 0 : i32
    %c0_i32_0 = arith.constant 0 : i32
    return %arg0, %c0_i32 : i32, i32
  }
}

</mosaic_0001>

<llo_original>
// kernel: mish_pallas.1
$region0: #{mish_pallas.1}
  #allocation0 [shape = 'u32[]', space=smem, size = 0x4, offset = 0x4, fixed_abs, tag = 'smem constant byte address 0x4 - core index']
  #allocation1 [shape = 'u32[144,128]{1,0:T(1,128)}', space=vmem, size = 0x12000, scoped, tag = 'internal scratch']
  %s0 = inlined_call_operand.vmem [shape: f32[64,512], index: 0, kind: input, shape index: {}]
  %s1 = inlined_call_operand.vmem [shape: f32[64,512], index: 1, kind: output, shape index: {}]
  %s2 = sld [smem:[#allocation0]]
  $region14: #{mish_pallas.1} parent=0
    _
  %s4 = ssub.s32 1, %s2
  %s5 = scalar_select 0, %s4, %s2
  // Predicated region
  $region2: #{mish_pallas.1} parent=0 // pred_check
    _
  $region3: #{mish_pallas.1} parent=0 // pred_check_branch
    %7 = sbr.rel (0) target = $region5
  $region4: #{mish_pallas.1} parent=0 // pred_region
    _
  $region5: #{mish_pallas.1} parent=0 // pred_fallthru
    _
  %v8 = vld [vmem:[%s0] sm:$0xff]
  %v9 = vld [vmem:[%s0 + $0x8] sm:$0xff]
  %v10 = vld [vmem:[%s0 + $0x10] sm:$0xff]
  %v11 = vld [vmem:[%s0 + $0x18] sm:$0xff]
  %v12 = vld [vmem:[%s0 + $0x20] sm:$0xff]
  %v13 = vld [vmem:[%s0 + $0x28] sm:$0xff]
  %v14 = vld [vmem:[%s0 + $0x30] sm:$0xff]
  %v15 = vld [vmem:[%s0 + $0x38] sm:$0xff]
  %v16 = vld [vmem:[%s0 + $0x40] sm:$0xff]
  %v17 = vld [vmem:[%s0 + $0x48] sm:$0xff]
  %v18 = vld [vmem:[%s0 + $0x50] sm:$0xff]
  %v19 = vld [vmem:[%s0 + $0x58] sm:$0xff]
  %v20 = vld [vmem:[%s0 + $0x60] sm:$0xff]
  %v21 = vld [vmem:[%s0 + $0x68] sm:$0xff]
  %v22 = vld [vmem:[%s0 + $0x70] sm:$0xff]
  %v23 = vld [vmem:[%s0 + $0x78] sm:$0xff]
  %v24 = vld [vmem:[%s0 + $0x80] sm:$0xff]
  %v25 = vld [vmem:[%s0 + $0x88] sm:$0xff]
  %v26 = vld [vmem:[%s0 + $0x90] sm:$0xff]
  %v27 = vld [vmem:[%s0 + $0x98] sm:$0xff]
  %v28 = vld [vmem:[%s0 + $0xa0] sm:$0xff]
  %v29 = vld [vmem:[%s0 + $0xa8] sm:$0xff]
  %v30 = vld [vmem:[%s0 + $0xb0] sm:$0xff]
  %v31 = vld [vmem:[%s0 + $0xb8] sm:$0xff]
  %v32 = vld [vmem:[%s0 + $0xc0] sm:$0xff]
  %v33 = vld [vmem:[%s0 + $0xc8] sm:$0xff]
  %v34 = vld [vmem:[%s0 + $0xd0] sm:$0xff]
  %v35 = vld [vmem:[%s0 + $0xd8] sm:$0xff]
  %v36 = vld [vmem:[%s0 + $0xe0] sm:$0xff]
  %v37 = vld [vmem:[%s0 + $0xe8] sm:$0xff]
  %v38 = vld [vmem:[%s0 + $0xf0] sm:$0xff]
  %v39 = vld [vmem:[%s0 + $0xf8] sm:$0xff]
  %v40 = vmax.f32 %v8, 0.0
  %v41 = vmax.f32 %v9, 0.0
  %v42 = vmax.f32 %v10, 0.0
  %v43 = vmax.f32 %v11, 0.0
  %v44 = vmax.f32 %v12, 0.0
  %v45 = vmax.f32 %v13, 0.0
  %v46 = vmax.f32 %v14, 0.0
  %v47 = vmax.f32 %v15, 0.0
  %v48 = vmax.f32 %v16, 0.0
  %v49 = vmax.f32 %v17, 0.0
  %v50 = vmax.f32 %v18, 0.0
  %v51 = vmax.f32 %v19, 0.0
  %v52 = vmax.f32 %v20, 0.0
  %v53 = vmax.f32 %v21, 0.0
  %v54 = vmax.f32 %v22, 0.0
  %v55 = vmax.f32 %v23, 0.0
  %v56 = vmax.f32 %v24, 0.0
  %v57 = vmax.f32 %v25, 0.0
  %v58 = vmax.f32 %v26, 0.0
  %v59 = vmax.f32 %v27, 0.0
  %v60 = vmax.f32 %v28, 0.0
  %v61 = vmax.f32 %v29, 0.0
  %v62 = vmax.f32 %v30, 0.0
  %v63 = vmax.f32 %v31, 0.0
  %v64 = vmax.f32 %v32, 0.0
  %v65 = vmax.f32 %v33, 0.0
  %v66 = vmax.f32 %v34, 0.0
  %v67 = vmax.f32 %v35, 0.0
  %v68 = vmax.f32 %v36, 0.0
  %v69 = vmax.f32 %v37, 0.0
  %v70 = vmax.f32 %v38, 0.0
  %v71 = vmax.f32 %v39, 0.0
  %v72 = vand.u32 2147483647, %v8
  %v73 = vand.u32 2147483647, %v9
  %v74 = vand.u32 2147483647, %v10
  %v75 = vand.u32 2147483647, %v11
  %v76 = vand.u32 2147483647, %v12
  %v77 = vand.u32 2147483647, %v13
  %v78 = vand.u32 2147483647, %v14
  %v79 = vand.u32 2147483647, %v15
  %v80 = vand.u32 2147483647, %v16
  %v81 = vand.u32 2147483647, %v17
  %v82 = vand.u32 2147483647, %v18
  %v83 = vand.u32 2147483647, %v19
  %v84 = vand.u32 2147483647, %v20
  %v85 = vand.u32 2147483647, %v21
  %v86 = vand.u32 2147483647, %v22
  %v87 = vand.u32 2147483647, %v23
  %v88 = vand.u32 2147483647, %v24
  %v89 = vand.u32 2147483647, %v25
  %v90 = vand.u32 2147483647, %v26
  %v91 = vand.u32 2147483647, %v27
  %v92 = vand.u32 2147483647, %v28
  %v93 = vand.u32 2147483647, %v29
  %v94 = vand.u32 2147483647, %v30
  %v95 = vand.u32 2147483647, %v31
  %v96 = vand.u32 2147483647, %v32
  %v97 = vand.u32 2147483647, %v33
  %v98 = vand.u32 2147483647, %v34
  %v99 = vand.u32 2147483647, %v35
  %v100 = vand.u32 2147483647, %v36
  %v101 = vand.u32 2147483647, %v37
  %v102 = vand.u32 2147483647, %v38
  %v103 = vand.u32 2147483647, %v39
  %v104 = vsub.f32 0.0, %v72
  %v105 = vsub.f32 0.0, %v73
  %v106 = vsub.f32 0.0, %v74
  %v107 = vsub.f32 0.0, %v75
  %v108 = vsub.f32 0.0, %v76
  %v109 = vsub.f32 0.0, %v77
  %v110 = vsub.f32 0.0, %v78
  %v111 = vsub.f32 0.0, %v79
  %v112 = vsub.f32 0.0, %v80
  %v113 = vsub.f32 0.0, %v81
  %v114 = vsub.f32 0.0, %v82
  %v115 = vsub.f32 0.0, %v83
  %v116 = vsub.f32 0.0, %v84
  %v117 = vsub.f32 0.0, %v85
  %v118 = vsub.f32 0.0, %v86
  %v119 = vsub.f32 0.0, %v87
  %v120 = vsub.f32 0.0, %v88
  %v121 = vsub.f32 0.0, %v89
  %v122 = vsub.f32 0.0, %v90
  %v123 = vsub.f32 0.0, %v91
  %v124 = vsub.f32 0.0, %v92
  %v125 = vsub.f32 0.0, %v93
  %v126 = vsub.f32 0.0, %v94
  %v127 = vsub.f32 0.0, %v95
  %v128 = vsub.f32 0.0, %v96
  %v129 = vsub.f32 0.0, %v97
  %v130 = vsub.f32 0.0, %v98
  %v131 = vsub.f32 0.0, %v99
  %v132 = vsub.f32 0.0, %v100
  %v133 = vsub.f32 0.0, %v101
  %v134 = vsub.f32 0.0, %v102
  %v135 = vsub.f32 0.0, %v103
  %v136 = vmul.f32 %v104, 1.442695
  %v137 = vpow.pop %v136
  %v138 = vmul.f32 %v105, 1.442695
  %v139 = vpow.pop %v138
  %v140 = vmul.f32 %v106, 1.442695
  %v141 = vpow.pop %v140
  %v142 = vmul.f32 %v107, 1.442695
  %v143 = vpow.pop %v142
  %v144 = vmul.f32 %v108, 1.442695
  %v145 = vpow.pop %v144
  %v146 = vmul.f32 %v109, 1.442695
  %v147 = vpow.pop %v146
  %v148 = vmul.f32 %v110, 1.442695
  %v149 = vpow.pop %v148
  %v150 = vmul.f32 %v111, 1.442695
  %v151 = vpow.pop %v150
  %v152 = vmul.f32 %v112, 1.442695
  %v153 = vpow.pop %v152
  %v154 = vmul.f32 %v113, 1.442695
  %v155 = vpow.pop %v154
  %v156 = vmul.f32 %v114, 1.442695
  %v157 = vpow.pop %v156
  %v158 = vmul.f32 %v115, 1.442695
  %v159 = vpow.pop %v158
  %v160 = vmul.f32 %v116, 1.442695
  %v161 = vpow.pop %v160
  %v162 = vmul.f32 %v117, 1.442695
  %v163 = vpow.pop %v162
  %v164 = vmul.f32 %v118, 1.442695
  %v165 = vpow.pop %v164
  %v166 = vmul.f32 %v119, 1.442695
  %v167 = vpow.pop %v166
  %v168 = vmul.f32 %v120, 1.442695
  %v169 = vpow.pop %v168
  %v170 = vmul.f32 %v121, 1.442695
  %v171 = vpow.pop %v170
  %v172 = vmul.f32 %v122, 1.442695
  %v173 = vpow.pop %v172
  %v174 = vmul.f32 %v123, 1.442695
  %v175 = vpow.pop %v174
  %v176 = vmul.f32 %v124, 1.442695
  %v177 = vpow.pop %v176
  %v178 = vmul.f32 %v125, 1.442695
  %v179 = vpow.pop %v178
  %v180 = vmul.f32 %v126, 1.442695
  %v181 = vpow.pop %v180
  %v182 = vmul.f32 %v127, 1.442695
  %v183 = vpow.pop %v182
  %v184 = vmul.f32 %v128, 1.442695
  %v185 = vpow.pop %v184
  %v186 = vmul.f32 %v129, 1.442695
  %v187 = vpow.pop %v186
  %v188 = vmul.f32 %v130, 1.442695
  %v189 = vpow.pop %v188
  %v190 = vmul.f32 %v131, 1.442695
  %v191 = vpow.pop %v190
  %v192 = vmul.f32 %v132, 1.442695
  %v193 = vpow.pop %v192
  %v194 = vmul.f32 %v133, 1.442695
  %v195 = vpow.pop %v194
  %v196 = vmul.f32 %v134, 1.442695
  %v197 = vpow.pop %v196
  %v198 = vmul.f32 %v135, 1.442695
  %v199 = vpow.pop %v198
  %v200 = vadd.f32 %v137, 1.0
  %v201 = vlog2.pop %v200
  %v202 = vmul.f32 %v201, 0.6931472
  %v203 = vmul.f32 -0.5, %v137
  %v204 = vadd.f32 %v203, 1.0
  %v205 = vmul.f32 %v204, %v137
  %v206 = vand.u32 2147483647, %v137
  %vm207 = vcmp.lt.f32.partialorder %v206, 0.0004427343
  %v208 = vsel %vm207, %v205, %v202
  %v209 = vadd.f32 %v139, 1.0
  %v210 = vlog2.pop %v209
  %v211 = vmul.f32 %v210, 0.6931472
  %v212 = vmul.f32 -0.5, %v139
  %v213 = vadd.f32 %v212, 1.0
  %v214 = vmul.f32 %v213, %v139
  %v215 = vand.u32 2147483647, %v139
  %vm216 = vcmp.lt.f32.partialorder %v215, 0.0004427343
  %v217 = vsel %vm216, %v214, %v211
  %v218 = vadd.f32 %v141, 1.0
  %v219 = vlog2.pop %v218
  %v220 = vmul.f32 %v219, 0.6931472
  %v221 = vmul.f32 -0.5, %v141
  %v222 = vadd.f32 %v221, 1.0
  %v223 = vmul.f32 %v222, %v141
  %v224 = vand.u32 2147483647, %v141
  %vm225 = vcmp.lt.f32.partialorder %v224, 0.0004427343
  %v226 = vsel %vm225, %v223, %v220
  %v227 = vadd.f32 %v143, 1.0
  %v228 = vlog2.pop %v227
  %v229 = vmul.f32 %v228, 0.6931472
  %v230 = vmul.f32 -0.5, %v143
  %v231 = vadd.f32 %v230, 1.0
  %v232 = vmul.f32 %v231, %v143
  %v233 = vand.u32 2147483647, %v143
  %vm234 = vcmp.lt.f32.partialorder %v233, 0.0004427343
  %v235 = vsel %vm234, %v232, %v229
  %v236 = vadd.f32 %v145, 1.0
  %v237 = vlog2.pop %v236
  %v238 = vmul.f32 %v237, 0.6931472
  %v239 = vmul.f32 -0.5, %v145
  %v240 = vadd.f32 %v239, 1.0
  %v241 = vmul.f32 %v240, %v145
  %v242 = vand.u32 2147483647, %v145
  %vm243 = vcmp.lt.f32.partialorder %v242, 0.0004427343
  %v244 = vsel %vm243, %v241, %v238
  %v245 = vadd.f32 %v147, 1.0
  %v246 = vlog2.pop %v245
  %v247 = vmul.f32 %v246, 0.6931472
  %v248 = vmul.f32 -0.5, %v147
  %v249 = vadd.f32 %v248, 1.0
  %v250 = vmul.f32 %v249, %v147
  %v251 = vand.u32 2147483647, %v147
  %vm252 = vcmp.lt.f32.partialorder %v251, 0.0004427343
  %v253 = vsel %vm252, %v250, %v247
  %v254 = vadd.f32 %v149, 1.0
  %v255 = vlog2.pop %v254
  %v256 = vmul.f32 %v255, 0.6931472
  %v257 = vmul.f32 -0.5, %v149
  %v258 = vadd.f32 %v257, 1.0
  %v259 = vmul.f32 %v258, %v149
  %v260 = vand.u32 2147483647, %v149
  %vm261 = vcmp.lt.f32.partialorder %v260, 0.0004427343
  %v262 = vsel %vm261, %v259, %v256
  %v263 = vadd.f32 %v151, 1.0
  %v264 = vlog2.pop %v263
  %v265 = vmul.f32 %v264, 0.6931472
  %v266 = vmul.f32 -0.5, %v151
  %v267 = vadd.f32 %v266, 1.0
  %v268 = vmul.f32 %v267, %v151
  %v269 = vand.u32 2147483647, %v151
  %vm270 = vcmp.lt.f32.partialorder %v269, 0.0004427343
  %v271 = vsel %vm270, %v268, %v265
  %v272 = vadd.f32 %v153, 1.0
  %v273 = vlog2.pop %v272
  %v274 = vmul.f32 %v273, 0.6931472
  %v275 = vmul.f32 -0.5, %v153
  %v276 = vadd.f32 %v275, 1.0
  %v277 = vmul.f32 %v276, %v153
  %v278 = vand.u32 2147483647, %v153
  %vm279 = vcmp.lt.f32.partialorder %v278, 0.0004427343
  %v280 = vsel %vm279, %v277, %v274
  %v281 = vadd.f32 %v155, 1.0
  %v282 = vlog2.pop %v281
  %v283 = vmul.f32 %v282, 0.6931472
  %v284 = vmul.f32 -0.5, %v155
  %v285 = vadd.f32 %v284, 1.0
  %v286 = vmul.f32 %v285, %v155
  %v287 = vand.u32 2147483647, %v155
  %vm288 = vcmp.lt.f32.partialorder %v287, 0.0004427343
  %v289 = vsel %vm288, %v286, %v283
  %v290 = vadd.f32 %v157, 1.0
  %v291 = vlog2.pop %v290
  %v292 = vmul.f32 %v291, 0.6931472
  %v293 = vmul.f32 -0.5, %v157
  %v294 = vadd.f32 %v293, 1.0
  %v295 = vmul.f32 %v294, %v157
  %v296 = vand.u32 2147483647, %v157
  %vm297 = vcmp.lt.f32.partialorder %v296, 0.0004427343
  %v298 = vsel %vm297, %v295, %v292
  %v299 = vadd.f32 %v159, 1.0
  %v300 = vlog2.pop %v299
  %v301 = vmul.f32 %v300, 0.6931472
  %v302 = vmul.f32 -0.5, %v159
  %v303 = vadd.f32 %v302, 1.0
  %v304 = vmul.f32 %v303, %v159
  %v305 = vand.u32 2147483647, %v159
  %vm306 = vcmp.lt.f32.partialorder %v305, 0.0004427343
  %v307 = vsel %vm306, %v304, %v301
  %v308 = vadd.f32 %v161, 1.0
  %v309 = vlog2.pop %v308
  %v310 = vmul.f32 %v309, 0.6931472
  %v311 = vmul.f32 -0.5, %v161
  %v312 = vadd.f32 %v311, 1.0
  %v313 = vmul.f32 %v312, %v161
  %v314 = vand.u32 2147483647, %v161
  %vm315 = vcmp.lt.f32.partialorder %v314, 0.0004427343
  %v316 = vsel %vm315, %v313, %v310
  %v317 = vadd.f32 %v163, 1.0
  %v318 = vlog2.pop %v317
  %v319 = vmul.f32 %v318, 0.6931472
  %v320 = vmul.f32 -0.5, %v163
  %v321 = vadd.f32 %v320, 1.0
  %v322 = vmul.f32 %v321, %v163
  %v323 = vand.u32 2147483647, %v163
  %vm324 = vcmp.lt.f32.partialorder %v323, 0.0004427343
  %v325 = vsel %vm324, %v322, %v319
  %v326 = vadd.f32 %v165, 1.0
  %v327 = vlog2.pop %v326
  %v328 = vmul.f32 %v327, 0.6931472
  %v329 = vmul.f32 -0.5, %v165
  %v330 = vadd.f32 %v329, 1.0
  %v331 = vmul.f32 %v330, %v165
  %v332 = vand.u32 2147483647, %v165
  %vm333 = vcmp.lt.f32.partialorder %v332, 0.0004427343
  %v334 = vsel %vm333, %v331, %v328
  %v335 = vadd.f32 %v167, 1.0
  %v336 = vlog2.pop %v335
  %v337 = vmul.f32 %v336, 0.6931472
  %v338 = vmul.f32 -0.5, %v167
  %v339 = vadd.f32 %v338, 1.0
  %v340 = vmul.f32 %v339, %v167
  %v341 = vand.u32 2147483647, %v167
  %vm342 = vcmp.lt.f32.partialorder %v341, 0.0004427343
  %v343 = vsel %vm342, %v340, %v337
  %v344 = vadd.f32 %v169, 1.0
  %v345 = vlog2.pop %v344
  %v346 = vmul.f32 %v345, 0.6931472
  %v347 = vmul.f32 -0.5, %v169
  %v348 = vadd.f32 %v347, 1.0
  %v349 = vmul.f32 %v348, %v169
  %v350 = vand.u32 2147483647, %v169
  %vm351 = vcmp.lt.f32.partialorder %v350, 0.0004427343
  %v352 = vsel %vm351, %v349, %v346
  %v353 = vadd.f32 %v171, 1.0
  %v354 = vlog2.pop %v353
  %v355 = vmul.f32 %v354, 0.6931472
  %v356 = vmul.f32 -0.5, %v171
  %v357 = vadd.f32 %v356, 1.0
  %v358 = vmul.f32 %v357, %v171
  %v359 = vand.u32 2147483647, %v171
  %vm360 = vcmp.lt.f32.partialorder %v359, 0.0004427343
  %v361 = vsel %vm360, %v358, %v355
  %v362 = vadd.f32 %v173, 1.0
  %v363 = vlog2.pop %v362
  %v364 = vmul.f32 %v363, 0.6931472
  %v365 = vmul.f32 -0.5, %v173
  %v366 = vadd.f32 %v365, 1.0
  %v367 = vmul.f32 %v366, %v173
  %v368 = vand.u32 2147483647, %v173
  %vm369 = vcmp.lt.f32.partialorder %v368, 0.0004427343
  %v370 = vsel %vm369, %v367, %v364
  %v371 = vadd.f32 %v175, 1.0
  %v372 = vlog2.pop %v371
  %v373 = vmul.f32 %v372, 0.6931472
  %v374 = vmul.f32 -0.5, %v175
  %v375 = vadd.f32 %v374, 1.0
  %v376 = vmul.f32 %v375, %v175
  %v377 = vand.u32 2147483647, %v175
  %vm378 = vcmp.lt.f32.partialorder %v377, 0.0004427343
  %v379 = vsel %vm378, %v376, %v373
  %v380 = vadd.f32 %v177, 1.0
  %v381 = vlog2.pop %v380
  %v382 = vmul.f32 %v381, 0.6931472
  %v383 = vmul.f32 -0.5, %v177
  %v384 = vadd.f32 %v383, 1.0
  %v385 = vmul.f32 %v384, %v177
  %v386 = vand.u32 2147483647, %v177
  %vm387 = vcmp.lt.f32.partialorder %v386, 0.0004427343
  %v388 = vsel %vm387, %v385, %v382
  %v389 = vadd.f32 %v179, 1.0
  %v390 = vlog2.pop %v389
  %v391 = vmul.f32 %v390, 0.6931472
  %v392 = vmul.f32 -0.5, %v179
  %v393 = vadd.f32 %v392, 1.0
  %v394 = vmul.f32 %v393, %v179
  %v395 = vand.u32 2147483647, %v179
  %vm396 = vcmp.lt.f32.partialorder %v395, 0.0004427343
  %v397 = vsel %vm396, %v394, %v391
  %v398 = vadd.f32 %v181, 1.0
  %v399 = vlog2.pop %v398
  %v400 = vmul.f32 %v399, 0.6931472
  %v401 = vmul.f32 -0.5, %v181
  %v402 = vadd.f32 %v401, 1.0
  %v403 = vmul.f32 %v402, %v181
  %v404 = vand.u32 2147483647, %v181
  %vm405 = vcmp.lt.f32.partialorder %v404, 0.0004427343
  %v406 = vsel %vm405, %v403, %v400
  %v407 = vadd.f32 %v183, 1.0
  %v408 = vlog2.pop %v407
  %v409 = vmul.f32 %v408, 0.6931472
  %v410 = vmul.f32 -0.5, %v183
  %v411 = vadd.f32 %v410, 1.0
  %v412 = vmul.f32 %v411, %v183
  %v413 = vand.u32 2147483647, %v183
  %vm414 = vcmp.lt.f32.partialorder %v413, 0.0004427343
  %v415 = vsel %vm414, %v412, %v409
  %v416 = vadd.f32 %v185, 1.0
  %v417 = vlog2.pop %v416
  %v418 = vmul.f32 %v417, 0.6931472
  %v419 = vmul.f32 -0.5, %v185
  %v420 = vadd.f32 %v419, 1.0
  %v421 = vmul.f32 %v420, %v185
  %v422 = vand.u32 2147483647, %v185
  %vm423 = vcmp.lt.f32.partialorder %v422, 0.0004427343
  %v424 = vsel %vm423, %v421, %v418
  %v425 = vadd.f32 %v187, 1.0
  %v426 = vlog2.pop %v425
  %v427 = vmul.f32 %v426, 0.6931472
  %v428 = vmul.f32 -0.5, %v187
  %v429 = vadd.f32 %v428, 1.0
  %v430 = vmul.f32 %v429, %v187
  %v431 = vand.u32 2147483647, %v187
  %vm432 = vcmp.lt.f32.partialorder %v431, 0.0004427343
  %v433 = vsel %vm432, %v430, %v427
  %v434 = vadd.f32 %v189, 1.0
  %v435 = vlog2.pop %v434
  %v436 = vmul.f32 %v435, 0.6931472
  %v437 = vmul.f32 -0.5, %v189
  %v438 = vadd.f32 %v437, 1.0
  %v439 = vmul.f32 %v438, %v189
  %v440 = vand.u32 2147483647, %v189
  %vm441 = vcmp.lt.f32.partialorder %v440, 0.0004427343
  %v442 = vsel %vm441, %v439, %v436
  %v443 = vadd.f32 %v191, 1.0
  %v444 = vlog2.pop %v443
  %v445 = vmul.f32 %v444, 0.6931472
  %v446 = vmul.f32 -0.5, %v191
  %v447 = vadd.f32 %v446, 1.0
  %v448 = vmul.f32 %v447, %v191
  %v449 = vand.u32 2147483647, %v191
  %vm450 = vcmp.lt.f32.partialorder %v449, 0.0004427343
  %v451 = vsel %vm450, %v448, %v445
  %v452 = vadd.f32 %v193, 1.0
  %v453 = vlog2.pop %v452
  %v454 = vmul.f32 %v453, 0.6931472
  %v455 = vmul.f32 -0.5, %v193
  %v456 = vadd.f32 %v455, 1.0
  %v457 = vmul.f32 %v456, %v193
  %v458 = vand.u32 2147483647, %v193
  %vm459 = vcmp.lt.f32.partialorder %v458, 0.0004427343
  %v460 = vsel %vm459, %v457, %v454
  %v461 = vadd.f32 %v195, 1.0
  %v462 = vlog2.pop %v461
  %v463 = vmul.f32 %v462, 0.6931472
  %v464 = vmul.f32 -0.5, %v195
  %v465 = vadd.f32 %v464, 1.0
  %v466 = vmul.f32 %v465, %v195
  %v467 = vand.u32 2147483647, %v195
  %vm468 = vcmp.lt.f32.partialorder %v467, 0.0004427343
  %v469 = vsel %vm468, %v466, %v463
  %v470 = vadd.f32 %v197, 1.0
  %v471 = vlog2.pop %v470
  %v472 = vmul.f32 %v471, 0.6931472
  %v473 = vmul.f32 -0.5, %v197
  %v474 = vadd.f32 %v473, 1.0
  %v475 = vmul.f32 %v474, %v197
  %v476 = vand.u32 2147483647, %v197
  %vm477 = vcmp.lt.f32.partialorder %v476, 0.0004427343
  %v478 = vsel %vm477, %v475, %v472
  %v479 = vadd.f32 %v199, 1.0
  %v480 = vlog2.pop %v479
  %v481 = vmul.f32 %v480, 0.6931472
  %v482 = vmul.f32 -0.5, %v199
  %v483 = vadd.f32 %v482, 1.0
  %v484 = vmul.f32 %v483, %v199
  %v485 = vand.u32 2147483647, %v199
  %vm486 = vcmp.lt.f32.partialorder %v485, 0.0004427343
  %v487 = vsel %vm486, %v484, %v481
  %v488 = vadd.f32 %v40, %v208
  %v489 = vadd.f32 %v41, %v217
  %v490 = vadd.f32 %v42, %v226
  %v491 = vadd.f32 %v43, %v235
  %v492 = vadd.f32 %v44, %v244
  %v493 = vadd.f32 %v45, %v253
  %v494 = vadd.f32 %v46, %v262
  %v495 = vadd.f32 %v47, %v271
  %v496 = vadd.f32 %v48, %v280
  %v497 = vadd.f32 %v49, %v289
  %v498 = vadd.f32 %v50, %v298
  %v499 = vadd.f32 %v51, %v307
  %v500 = vadd.f32 %v52, %v316
  %v501 = vadd.f32 %v53, %v325
  %v502 = vadd.f32 %v54, %v334
  %v503 = vadd.f32 %v55, %v343
  %v504 = vadd.f32 %v56, %v352
  %v505 = vadd.f32 %v57, %v361
  %v506 = vadd.f32 %v58, %v370
  %v507 = vadd.f32 %v59, %v379
  %v508 = vadd.f32 %v60, %v388
  %v509 = vadd.f32 %v61, %v397
  %v510 = vadd.f32 %v62, %v406
  %v511 = vadd.f32 %v63, %v415
  %v512 = vadd.f32 %v64, %v424
  %v513 = vadd.f32 %v65, %v433
  %v514 = vadd.f32 %v66, %v442
  %v515 = vadd.f32 %v67, %v451
  %v516 = vadd.f32 %v68, %v460
  %v517 = vadd.f32 %v69, %v469
  %v518 = vadd.f32 %v70, %v478
  %v519 = vadd.f32 %v71, %v487
  %v520 = vtanh.pop %v488
  %v521 = vtanh.pop %v489
  %v522 = vtanh.pop %v490
  %v523 = vtanh.pop %v491
  %v524 = vtanh.pop %v492
  %v525 = vtanh.pop %v493
  %v526 = vtanh.pop %v494
  %v527 = vtanh.pop %v495
  %v528 = vtanh.pop %v496
  %v529 = vtanh.pop %v497
  %v530 = vtanh.pop %v498
  %v531 = vtanh.pop %v499
  %v532 = vtanh.pop %v500
  %v533 = vtanh.pop %v501
  %v534 = vtanh.pop %v502
  %v535 = vtanh.pop %v503
  %v536 = vtanh.pop %v504
  %v537 = vtanh.pop %v505
  %v538 = vtanh.pop %v506
  %v539 = vtanh.pop %v507
  %v540 = vtanh.pop %v508
  %v541 = vtanh.pop %v509
  %v542 = vtanh.pop %v510
  %v543 = vtanh.pop %v511
  %v544 = vtanh.pop %v512
  %v545 = vtanh.pop %v513
  %v546 = vtanh.pop %v514
  %v547 = vtanh.pop %v515
  %v548 = vtanh.pop %v516
  %v549 = vtanh.pop %v517
  %v550 = vtanh.pop %v518
  %v551 = vtanh.pop %v519
  %v552 = vmul.f32 %v8, %v520
  %v553 = vmul.f32 %v9, %v521
  %v554 = vmul.f32 %v10, %v522
  %v555 = vmul.f32 %v11, %v523
  %v556 = vmul.f32 %v12, %v524
  %v557 = vmul.f32 %v13, %v525
  %v558 = vmul.f32 %v14, %v526
  %v559 = vmul.f32 %v15, %v527
  %v560 = vmul.f32 %v16, %v528
  %v561 = vmul.f32 %v17, %v529
  %v562 = vmul.f32 %v18, %v530
  %v563 = vmul.f32 %v19, %v531
  %v564 = vmul.f32 %v20, %v532
  %v565 = vmul.f32 %v21, %v533
  %v566 = vmul.f32 %v22, %v534
  %v567 = vmul.f32 %v23, %v535
  %v568 = vmul.f32 %v24, %v536
  %v569 = vmul.f32 %v25, %v537
  %v570 = vmul.f32 %v26, %v538
  %v571 = vmul.f32 %v27, %v539
  %v572 = vmul.f32 %v28, %v540
  %v573 = vmul.f32 %v29, %v541
  %v574 = vmul.f32 %v30, %v542
  %v575 = vmul.f32 %v31, %v543
  %v576 = vmul.f32 %v32, %v544
  %v577 = vmul.f32 %v33, %v545
  %v578 = vmul.f32 %v34, %v546
  %v579 = vmul.f32 %v35, %v547
  %v580 = vmul.f32 %v36, %v548
  %v581 = vmul.f32 %v37, %v549
  %v582 = vmul.f32 %v38, %v550
  %v583 = vmul.f32 %v39, %v551
  %584 = vst [vmem:[%s1] sm:$0xff] %v552
  %585 = vst [vmem:[%s1 + $0x8] sm:$0xff] %v553
  %586 = vst [vmem:[%s1 + $0x10] sm:$0xff] %v554
  %587 = vst [vmem:[%s1 + $0x18] sm:$0xff] %v555
  %588 = vst [vmem:[%s1 + $0x20] sm:$0xff] %v556
  %589 = vst [vmem:[%s1 + $0x28] sm:$0xff] %v557
  %590 = vst [vmem:[%s1 + $0x30] sm:$0xff] %v558
  %591 = vst [vmem:[%s1 + $0x38] sm:$0xff] %v559
  %592 = vst [vmem:[%s1 + $0x40] sm:$0xff] %v560
  %593 = vst [vmem:[%s1 + $0x48] sm:$0xff] %v561
  %594 = vst [vmem:[%s1 + $0x50] sm:$0xff] %v562
  %595 = vst [vmem:[%s1 + $0x58] sm:$0xff] %v563
  %596 = vst [vmem:[%s1 + $0x60] sm:$0xff] %v564
  %597 = vst [vmem:[%s1 + $0x68] sm:$0xff] %v565
  %598 = vst [vmem:[%s1 + $0x70] sm:$0xff] %v566
  %599 = vst [vmem:[%s1 + $0x78] sm:$0xff] %v567
  %600 = vst [vmem:[%s1 + $0x80] sm:$0xff] %v568
  %601 = vst [vmem:[%s1 + $0x88] sm:$0xff] %v569
  %602 = vst [vmem:[%s1 + $0x90] sm:$0xff] %v570
  %603 = vst [vmem:[%s1 + $0x98] sm:$0xff] %v571
  %604 = vst [vmem:[%s1 + $0xa0] sm:$0xff] %v572
  %605 = vst [vmem:[%s1 + $0xa8] sm:$0xff] %v573
  %606 = vst [vmem:[%s1 + $0xb0] sm:$0xff] %v574
  %607 = vst [vmem:[%s1 + $0xb8] sm:$0xff] %v575
  %608 = vst [vmem:[%s1 + $0xc0] sm:$0xff] %v576
  %609 = vst [vmem:[%s1 + $0xc8] sm:$0xff] %v577
  %610 = vst [vmem:[%s1 + $0xd0] sm:$0xff] %v578
  %611 = vst [vmem:[%s1 + $0xd8] sm:$0xff] %v579
  %612 = vst [vmem:[%s1 + $0xe0] sm:$0xff] %v580
  %613 = vst [vmem:[%s1 + $0xe8] sm:$0xff] %v581
  %614 = vst [vmem:[%s1 + $0xf0] sm:$0xff] %v582
  %615 = vst [vmem:[%s1 + $0xf8] sm:$0xff] %v583
  // Predicated region
  $region6: #{mish_pallas.1} parent=0 // pred_check
    _
  $region7: #{mish_pallas.1} parent=0 // pred_check_branch
    %617 = sbr.rel (0) target = $region9
  $region8: #{mish_pallas.1} parent=0 // pred_region
    _
  $region9: #{mish_pallas.1} parent=0 // pred_fallthru
    _
  // Predicated region
  $region10: #{mish_pallas.1} parent=0 // pred_check
    _
  $region11: #{mish_pallas.1} parent=0 // pred_check_branch
    %619 = sbr.rel (0) target = $region13
  $region12: #{mish_pallas.1} parent=0 // pred_region
    _
  $region13: #{mish_pallas.1} parent=0 // pred_fallthru
    _

</llo_original>
